<compile_context>
chip_gen: v5e
topology: v5e:2x2
jax: 0.10.0
libtpu: 0.0.40
codegen_flags: <defaults>
</compile_context>

<pallas_src>
import functools

import jax
import jax.numpy as jnp
from jax.experimental import pallas as pl
from jax.experimental.pallas import tpu as pltpu


# ----------------------------- Pallas kernels ------------------------------

def x_stats_kernel(x_ref, gram_ref, sum_ref):
    """Accumulate per-n Gram(x) (Cin,Cin) and rowsum(x) (Cin,1) over hw tiles."""
    t = pl.program_id(1)

    @pl.when(t == 0)
    def _():
        gram_ref[...] = jnp.zeros_like(gram_ref)
        sum_ref[...] = jnp.zeros_like(sum_ref)

    x = x_ref[0]                                          # (Cin, tile_m) f32
    # Contraction over the big lane axis on the MXU; tiny (Cin, Cin) result.
    gram_ref[0] = gram_ref[0] + jax.lax.dot_general(
        x, x, (((1,), (1,)), ((), ())), preferred_element_type=jnp.float32)
    sum_ref[0] = sum_ref[0] + jnp.sum(x, axis=1, keepdims=True)   # (Cin, 1)


def conv_bn_act_kernel(x_ref, w_ref, shift_ref, o_ref, *, active):
    """Fused 1x1 conv (BN scale pre-folded into W) + shift + optional ReLU."""
    y = jnp.dot(w_ref[...], x_ref[0], preferred_element_type=jnp.float32)
    y = y + shift_ref[...]                                # (Cout, tile_m)
    if active:
        y = jnp.maximum(y, 0.0)
    o_ref[0] = y.astype(o_ref.dtype)


# ------------------------------- wrapper ------------------------------------

def _pick_tile(hw_padded, cap=8192):
    """Largest multiple of 128 that divides hw_padded and is <= cap."""
    best = 128
    for t in range(128, min(cap, hw_padded) + 1, 128):
        if hw_padded % t == 0:
            best = t
    return best


def lin_me_forward(x_nchw, conv_w, gamma, beta, *, active=True, eps=1e-5,
                   tile_cap=8192):
    """Forward of LinMe with k=1, s=1, p=0 (module defaults).

    x_nchw: (N, Cin, H, W) float32
    conv_w: (Cout, Cin, 1, 1) float32   (PyTorch Conv2d weight layout)
    gamma, beta: (Cout,) float32        (BatchNorm2d affine params)
    """
    # TODO(synk): only the default k=1/s=1/p=0 (pointwise conv) path is
    # implemented; a general kxk convolution would need an im2col stage.
    # TODO(synk): BatchNorm2d running_mean/running_var buffer updates (training
    # side effect) are not produced; output matches the normalized activations.
    N, Cin, H, W = x_nchw.shape
    Cout = conv_w.shape[0]
    HW = H * W

    # NCHW -> (N, Cin, HW): contiguous reshape, no transpose / extra HBM pass.
    x3 = x_nchw.reshape(N, Cin, HW).astype(jnp.float32)
    w_mat = conv_w.reshape(Cout, Cin).astype(jnp.float32)

    # Pad the spatial axis to a multiple of 128 so every tile is lane-dense
    # and bounded in VMEM (padded zeros contribute nothing to Gram/rowsum, so
    # the batch statistics stay exact; padded output columns are sliced off).
    pad = (-HW) % 128
    if pad:
        x3 = jnp.pad(x3, ((0, 0), (0, 0), (0, pad)))
    HWp = HW + pad
    tile_m = _pick_tile(HWp, tile_cap)
    n_tiles = HWp // tile_m

    # --- stage 1: input sufficient statistics (conv output never hits HBM) --
    gram_out, sum_out = pl.pallas_call(
        x_stats_kernel,
        out_shape=(
            jax.ShapeDtypeStruct((N, Cin, Cin), jnp.float32),
            jax.ShapeDtypeStruct((N, Cin, 1), jnp.float32),
        ),
        grid_spec=pltpu.PrefetchScalarGridSpec(
            num_scalar_prefetch=0,
            grid=(N, n_tiles),
            in_specs=[pl.BlockSpec((1, Cin, tile_m), lambda n, t: (n, 0, t))],
            out_specs=[
                pl.BlockSpec((1, Cin, Cin), lambda n, t: (n, 0, 0)),  # per-n resident
                pl.BlockSpec((1, Cin, 1), lambda n, t: (n, 0, 0)),    # per-n resident
            ],
        ),
        compiler_params=pltpu.CompilerParams(
            dimension_semantics=("parallel", "arbitrary")),
    )(x3)

    # --- glue: fold batch stats + BN affine into weight scale / shift -------
    gram = jnp.sum(gram_out, axis=0)                      # (Cin, Cin)
    rowsum = jnp.sum(sum_out, axis=0)[:, 0]               # (Cin,)
    count = jnp.float32(N * HW)
    mean = (w_mat @ rowsum) / count                       # (Cout,) per-channel mean of y
    ey2 = jnp.einsum('oc,cd,od->o', w_mat, gram, w_mat) / count
    var = jnp.maximum(ey2 - mean * mean, 0.0)             # biased var (training BN)
    inv_std = jax.lax.rsqrt(var + eps)
    scale = gamma.astype(jnp.float32) * inv_std           # (Cout,)
    shift = (beta.astype(jnp.float32) - mean * scale).reshape(Cout, 1)
    w_scaled = w_mat * scale[:, None]                     # BN scale folded into conv

    # --- stage 2: fused conv (recomputed, Cin tiny) + BN shift + ReLU -------
    kern = functools.partial(conv_bn_act_kernel, active=active)
    out3 = pl.pallas_call(
        kern,
        out_shape=jax.ShapeDtypeStruct((N, Cout, HWp), jnp.float32),
        grid_spec=pltpu.PrefetchScalarGridSpec(
            num_scalar_prefetch=0,
            grid=(N, n_tiles),
            in_specs=[
                pl.BlockSpec((1, Cin, tile_m), lambda n, t: (n, 0, t)),
                pl.BlockSpec((Cout, Cin), lambda n, t: (0, 0)),
                pl.BlockSpec((Cout, 1), lambda n, t: (0, 0)),
            ],
            out_specs=pl.BlockSpec((1, Cout, tile_m), lambda n, t: (n, 0, t)),
        ),
        compiler_params=pltpu.CompilerParams(
            dimension_semantics=("parallel", "parallel")),
    )(x3, w_scaled, shift)

    if pad:
        out3 = out3[:, :, :HW]
    # (N, Cout, HW) -> NCHW, pure reshape.
    return out3.reshape(N, Cout, H, W)


# ------------------------------ reference -----------------------------------

def lin_me_reference(x_nchw, conv_w, gamma, beta, *, active=True, eps=1e-5):
    N, Cin, H, W = x_nchw.shape
    Cout = conv_w.shape[0]
    w_mat = conv_w.reshape(Cout, Cin)
    y = jnp.einsum('oc,nchw->nohw', w_mat, x_nchw)
    mean = jnp.mean(y, axis=(0, 2, 3), keepdims=True)
    var = jnp.mean((y - mean) ** 2, axis=(0, 2, 3), keepdims=True)  # biased
    y = (y - mean) * jax.lax.rsqrt(var + eps)
    y = y * gamma.reshape(1, Cout, 1, 1) + beta.reshape(1, Cout, 1, 1)
    if active:
        y = jnp.maximum(y, 0.0)
    return y


# -------------------------------- main ---------------------------------------

if __name__ == "__main__":
    key = jax.random.PRNGKey(0)
    k_x, k_w = jax.random.split(key)

    N, Cin, H, W = 2, 4, 16, 16
    Cout = 8

    x = jax.random.normal(k_x, (N, Cin, H, W), dtype=jnp.float32)

    # Deterministic parameter init (synthetic; mirrors shapes of
    # nn.Conv2d(Cin, Cout, 1, bias=False) and nn.BatchNorm2d(Cout) defaults).
    conv_w = 0.1 * jax.random.normal(k_w, (Cout, Cin, 1, 1), dtype=jnp.float32)
    gamma = jnp.ones((Cout,), dtype=jnp.float32)
    beta = jnp.zeros((Cout,), dtype=jnp.float32)

    out = lin_me_forward(x, conv_w, gamma, beta, active=True)
    out = jax.block_until_ready(out)
    ref = lin_me_reference(x, conv_w, gamma, beta, active=True)
    assert out.shape == (N, Cout, H, W)
    assert jnp.allclose(out, ref, atol=1e-4, rtol=1e-4), "mismatch vs reference"

    # also exercise the active=False branch (no ReLU)
    out_na = lin_me_forward(x, conv_w, gamma, beta, active=False)
    out_na = jax.block_until_ready(out_na)
    ref_na = lin_me_reference(x, conv_w, gamma, beta, active=False)
    assert jnp.allclose(out_na, ref_na, atol=1e-4, rtol=1e-4), "mismatch (no ReLU)"

    print("KERNEL_OK")
</pallas_src>

<mosaic_0001>
module attributes {stable_mosaic.version = 11 : i64} {
  func.func @x_stats_kernel(%arg0: i32, %arg1: i32, %arg2: memref<1x4x256xf32, #tpu.memory_space<vmem>>, %arg3: memref<1x4x4xf32, #tpu.memory_space<vmem>>, %arg4: memref<1x4x1xf32, #tpu.memory_space<vmem>>) attributes {dimension_semantics = [#tpu.dimension_semantics<parallel>, #tpu.dimension_semantics<arbitrary>], iteration_bounds = array<i64: 2, 1>, scalar_prefetch = 0 : i64, scratch_operands = 0 : i64, tpu.core_type = #tpu.core_type<tc>, window_params = [{transform_indices = @transform_0, window_bounds = array<i64: 1, 4, 256>}, {transform_indices = @transform_1, window_bounds = array<i64: 1, 4, 4>}, {transform_indices = @transform_2, window_bounds = array<i64: 1, 4, 1>}]} {
    %c0_i32 = arith.constant 0 : i32
    %0 = arith.cmpi eq, %arg1, %c0_i32 : i32
    %1 = arith.extui %0 : i1 to i32
    %c0_i32_0 = arith.constant 0 : i32
    %2 = arith.cmpi ne, %1, %c0_i32_0 : i32
    scf.if %2 {
      %cst_16 = arith.constant 0.000000e+00 : f32
      %20 = vector.broadcast %cst_16 : f32 to vector<1x4x4xf32>
      %c0_17 = arith.constant 0 : index
      %c0_18 = arith.constant 0 : index
      %c0_19 = arith.constant 0 : index
      %21 = vector.load %arg3[%c0_17, %c0_18, %c0_19] : memref<1x4x4xf32, #tpu.memory_space<vmem>>, vector<1x4x4xf32>
      tpu.vector_store %arg3[%c0_17, %c0_18, %c0_19], %20 {strides = array<i32>} : memref<1x4x4xf32, #tpu.memory_space<vmem>>, vector<1x4x4xf32>,
      %cst_20 = arith.constant 0.000000e+00 : f32
      %22 = vector.broadcast %cst_20 : f32 to vector<1x4x1xf32>
      %c0_21 = arith.constant 0 : index
      %c0_22 = arith.constant 0 : index
      %c0_23 = arith.constant 0 : index
      %23 = vector.load %arg4[%c0_21, %c0_22, %c0_23] : memref<1x4x1xf32, #tpu.memory_space<vmem>>, vector<1x4x1xf32>
      tpu.vector_store %arg4[%c0_21, %c0_22, %c0_23], %22 {strides = array<i32>} : memref<1x4x1xf32, #tpu.memory_space<vmem>>, vector<1x4x1xf32>,
    } else {
    }
    %c0 = arith.constant 0 : index
    %c0_1 = arith.constant 0 : index
    %c0_2 = arith.constant 0 : index
    %3 = vector.load %arg2[%c0, %c0_1, %c0_2] : memref<1x4x256xf32, #tpu.memory_space<vmem>>, vector<1x4x256xf32>
    %4 = vector.shape_cast %3 : vector<1x4x256xf32> to vector<4x256xf32>
    %c0_3 = arith.constant 0 : index
    %c0_4 = arith.constant 0 : index
    %c0_5 = arith.constant 0 : index
    %5 = vector.load %arg3[%c0_3, %c0_4, %c0_5] : memref<1x4x4xf32, #tpu.memory_space<vmem>>, vector<1x4x4xf32>
    %6 = vector.shape_cast %5 : vector<1x4x4xf32> to vector<4x4xf32>
    %cst = arith.constant dense<0.000000e+00> : vector<4x4xf32>
    %7 = tpu.matmul %4, %4, %cst {dimension_numbers = #tpu.dot_dimension_numbers<[1], [1], [0], [0], [0, 0, 1, 0], [], []>} : vector<4x256xf32>, vector<4x256xf32>, vector<4x4xf32> -> vector<4x4xf32>
    %8 = arith.addf %6, %7 : vector<4x4xf32>
    %c0_6 = arith.constant 0 : index
    %c0_7 = arith.constant 0 : index
    %c0_8 = arith.constant 0 : index
    %9 = vector.load %arg3[%c0_6, %c0_7, %c0_8] : memref<1x4x4xf32, #tpu.memory_space<vmem>>, vector<1x4x4xf32>
    %10 = vector.shape_cast %9 : vector<1x4x4xf32> to vector<4x4xf32>
    %11 = vector.shape_cast %8 : vector<4x4xf32> to vector<1x4x4xf32>
    tpu.vector_store %arg3[%c0_6, %c0_7, %c0_8], %11 {strides = array<i32>} : memref<1x4x4xf32, #tpu.memory_space<vmem>>, vector<1x4x4xf32>,
    %c0_9 = arith.constant 0 : index
    %c0_10 = arith.constant 0 : index
    %c0_11 = arith.constant 0 : index
    %12 = vector.load %arg4[%c0_9, %c0_10, %c0_11] : memref<1x4x1xf32, #tpu.memory_space<vmem>>, vector<1x4x1xf32>
    %13 = vector.shape_cast %12 : vector<1x4x1xf32> to vector<4x1xf32>
    %cst_12 = arith.constant dense<0.000000e+00> : vector<4xf32>
    %14 = vector.multi_reduction <add>, %4, %cst_12 [1] : vector<4x256xf32> to vector<4xf32>
    %15 = vector.shape_cast %14 : vector<4xf32> to vector<4x1xf32>
    %16 = arith.addf %13, %15 : vector<4x1xf32>
    %c0_13 = arith.constant 0 : index
    %c0_14 = arith.constant 0 : index
    %c0_15 = arith.constant 0 : index
    %17 = vector.load %arg4[%c0_13, %c0_14, %c0_15] : memref<1x4x1xf32, #tpu.memory_space<vmem>>, vector<1x4x1xf32>
    %18 = vector.shape_cast %17 : vector<1x4x1xf32> to vector<4x1xf32>
    %19 = vector.shape_cast %16 : vector<4x1xf32> to vector<1x4x1xf32>
    tpu.vector_store %arg4[%c0_13, %c0_14, %c0_15], %19 {strides = array<i32>} : memref<1x4x1xf32, #tpu.memory_space<vmem>>, vector<1x4x1xf32>,
    return
  }
  func.func @transform_0(%arg0: i32, %arg1: i32) -> (i32, i32, i32) {
    %c0_i32 = arith.constant 0 : i32
    %c0_i32_0 = arith.constant 0 : i32
    return %arg0, %c0_i32, %arg1 : i32, i32, i32
  }
  func.func @transform_1(%arg0: i32, %arg1: i32) -> (i32, i32, i32) {
    %c0_i32 = arith.constant 0 : i32
    %c0_i32_0 = arith.constant 0 : i32
    %c0_i32_1 = arith.constant 0 : i32
    return %arg0, %c0_i32, %c0_i32_0 : i32, i32, i32
  }
  func.func @transform_2(%arg0: i32, %arg1: i32) -> (i32, i32, i32) {
    %c0_i32 = arith.constant 0 : i32
    %c0_i32_0 = arith.constant 0 : i32
    %c0_i32_1 = arith.constant 0 : i32
    return %arg0, %c0_i32, %c0_i32_0 : i32, i32, i32
  }
}

</mosaic_0001>

<llo_original>
// kernel: tpu_custom_call.1
$region0: #{tpu_custom_call.1}
  #allocation0 [shape = 'u32[]', space=smem, size = 0x4, offset = 0x4, fixed_abs, tag = 'smem constant byte address 0x4 - core index']
  #allocation1 [shape = 'u32[72,128]{1,0:T(1,128)}', space=vmem, size = 0x9000, scoped, tag = 'internal scratch']
  %s0 = inlined_call_operand.hbm [shape: f32[2,4,256], index: 0, kind: input, shape index: {}]
  %s1 = inlined_call_operand.hbm [shape: f32[2,4,4], index: 1, kind: output, shape index: {0}]
  %s2 = inlined_call_operand.vmem [shape: f32[2,4,1], index: 2, kind: output, shape index: {1}]
  %3 = xla_tuple %s1, %s2
  %s4 = sld [smem:[#allocation0]]
  $region53: #{tpu_custom_call.1} parent=0
    _
  %s6 = ssub.s32 1, %s4
  %s7 = scalar_select 0, %s6, %s4
  $region1: #{tpu_custom_call.1} parent=0
    #allocation2 [shape = 'u8[8192]{0}', space=vmem, size = 0x2000, scoped, tag = 'input window, operand 0']
    #allocation3 [shape = 's32[2]{0}', space=sflag, size = 0x8, scoped, tag = 'scoped memory for tpu_custom_call.1']
    #allocation4 [shape = 's32[2]{0}', space=sflag, size = 0x8, scoped, tag = 'scoped memory for tpu_custom_call.1']
    #allocation5 [shape = 'u8[4096]{0}', space=vmem, size = 0x1000, scoped, tag = 'output window, operand 0']
    %8 = vsyncpa [#allocation3], 0
    %s9 = scalar_lea.sflag [#allocation3], 1
    %10 = vsyncpa %s9, 0
    %11 = vsyncpa [#allocation4], 0
    %s12 = scalar_lea.sflag [#allocation4], 1
    %13 = vsyncpa %s12, 0
    loop: start=0, step=1, limit=4
    $region2: #{tpu_custom_call.1} parent=1 // loop_pre_header
      _
    $region3: #{tpu_custom_call.1} parent=1 // loop_header
      %s15 = sphi 0, %s19
      %p16 = scmp.ge.s32.totalorder %s15, 4
      %s22 = sphi 0, %s34
      %s23 = sphi 0, %s30
      %s24 = sphi 0, %s22
      %s25 = sphi 0, %s23
      %s26 = sphi 0, %s24
      %s27 = sphi 0, %s25
      %s39 = sphi 0, %s41
      %s42 = sphi 0, %s39
      %s43 = sphi 0, %s42
      %s59 = sphi 0, %s43
      %s65 = sphi 0, %s67
      %s68 = sphi 0, %s65
      %s69 = sphi 0, %s68
      %s85 = sphi 0, %s69
      %s91 = sphi 0, %s93
      %s94 = sphi 0, %s91
      %s95 = sphi 0, %s94
      %s111 = sphi 0, %s95
    $region4: #{tpu_custom_call.1} parent=1 // loop_header_branch
      %18 = sbr.rel (%p16) target = $region8
    $region5: #{tpu_custom_call.1} parent=1 // loop_body
      %s20 = ssub.s32 %s15, 1
      %s21 = ssub.s32 %s15, 2
      %s28 = sadd.s32 1, %s23
      %p29 = scmp.ge.s32.totalorder %s28, 1
      %s30 = scalar_select %p29, 0, %s28
      %s31 = sadd.s32 1, %s22
      %s32 = scalar_select %p29, %s31, %s22
      %p33 = scmp.ge.s32.totalorder %s32, 2
      %s34 = scalar_select %p33, 0, %s32
      %s35 = ssub.s32 %s22, %s34
      %s36 = ssub.s32 %s23, %s30
      %s37 = sor.u32 %s35, %s36
      %p38 = scmp.eq.s32.totalorder %s37, 0
      %s40 = sadd.s32 %s39, 1
      %s41 = scalar_select %p38, %s39, %s40
      %p44 = pneg %p38
      %p45 = scmp.eq.s32.totalorder %s15, 1
      %p46 = por %p44, %p45
      %p47 = scmp.ne.s32.totalorder %s39, %s42
      %p48 = scmp.eq.s32.totalorder %s15, 0
      %p49 = por %p47, %p48
      %p50 = scmp.ne.s32.totalorder %s39, %s42
      %p51 = scmp.eq.s32.totalorder %s20, 1
      %p52 = por %p50, %p51
      %p53 = scmp.ne.s32.totalorder %s42, %s43
      %p54 = scmp.eq.s32.totalorder %s20, 0
      %p55 = por %p53, %p54
      %p56 = scmp.ne.s32.totalorder %s42, %s43
      %p57 = scmp.eq.s32.totalorder %s21, 1
      %p58 = por %p56, %p57
      %p60 = scmp.ne.s32.totalorder %s43, %s59
      %p61 = scmp.eq.s32.totalorder %s21, 0
      %p62 = por %p60, %p61
      %s63 = ssub.s32 %s22, %s34
      %p64 = scmp.eq.s32.totalorder %s63, 0
      %s66 = sadd.s32 %s65, 1
      %s67 = scalar_select %p64, %s65, %s66
      %p70 = pneg %p64
      %p71 = scmp.eq.s32.totalorder %s15, 1
      %p72 = por %p70, %p71
      %p73 = scmp.ne.s32.totalorder %s65, %s68
      %p74 = scmp.eq.s32.totalorder %s15, 0
      %p75 = por %p73, %p74
      %p76 = scmp.ne.s32.totalorder %s65, %s68
      %p77 = scmp.eq.s32.totalorder %s20, 1
      %p78 = por %p76, %p77
      %p79 = scmp.ne.s32.totalorder %s68, %s69
      %p80 = scmp.eq.s32.totalorder %s20, 0
      %p81 = por %p79, %p80
      %p82 = scmp.ne.s32.totalorder %s68, %s69
      %p83 = scmp.eq.s32.totalorder %s21, 1
      %p84 = por %p82, %p83
      %p86 = scmp.ne.s32.totalorder %s69, %s85
      %p87 = scmp.eq.s32.totalorder %s21, 0
      %p88 = por %p86, %p87
      %s89 = ssub.s32 %s22, %s34
      %p90 = scmp.eq.s32.totalorder %s89, 0
      %s92 = sadd.s32 %s91, 1
      %s93 = scalar_select %p90, %s91, %s92
      %p96 = pneg %p90
      %p97 = scmp.eq.s32.totalorder %s15, 1
      %p98 = por %p96, %p97
      %p99 = scmp.ne.s32.totalorder %s91, %s94
      %p100 = scmp.eq.s32.totalorder %s15, 0
      %p101 = por %p99, %p100
      %p102 = scmp.ne.s32.totalorder %s91, %s94
      %p103 = scmp.eq.s32.totalorder %s20, 1
      %p104 = por %p102, %p103
      %p105 = scmp.ne.s32.totalorder %s94, %s95
      %p106 = scmp.eq.s32.totalorder %s20, 0
      %p107 = por %p105, %p106
      %p108 = scmp.ne.s32.totalorder %s94, %s95
      %p109 = scmp.eq.s32.totalorder %s21, 1
      %p110 = por %p108, %p109
      %p112 = scmp.ne.s32.totalorder %s95, %s111
      %p113 = scmp.eq.s32.totalorder %s21, 0
      %p114 = por %p112, %p113
      %p115 = scmp.le.s32.totalorder 1, %s15
      %p116 = scmp.lt.s32.totalorder %s15, 3
      %p117 = pnand %p115, %p116
      %p118 = pneg %p117
      // Predicated region
      $region9: #{tpu_custom_call.1} parent=5 // pred_check
        _
      $region10: #{tpu_custom_call.1} parent=5 // pred_check_branch
        %120 = sbr.rel (%p117) target = $region12
      $region11: #{tpu_custom_call.1} parent=5 // pred_region
        %s121 = ssub.s32 %s15, 1
      $region12: #{tpu_custom_call.1} parent=5 // pred_fallthru
        _
      %p122 = scmp.lt.s32.totalorder %s15, 2
      // Predicated region
      $region13: #{tpu_custom_call.1} parent=5 // pred_check
        %p123 = pneg %p122
      $region14: #{tpu_custom_call.1} parent=5 // pred_check_branch
        %125 = sbr.rel (%p123) target = $region16
      $region15: #{tpu_custom_call.1} parent=5 // pred_region
        // Predicated region
        $region17: #{tpu_custom_call.1} parent=15 // pred_check
          %p126 = pneg %p49
        $region18: #{tpu_custom_call.1} parent=15 // pred_check_branch
          %128 = sbr.rel (%p126) target = $region20
        $region19: #{tpu_custom_call.1} parent=15 // pred_region
          %s129 = sand.u32 %s39, 1
          %s130 = scalar_lea.sflag [#allocation3], %s129
          %s131 = sand.u32 %s39, 1
          %s132 = smul.addr %s131, 8
          %s133 = scalar_lea.vmem [#allocation2], %s132
          %s134 = smul.u32 2, %s23
          %136 = vsyncadd %s130, 0
          %s137 = smul.addr %s22, 2
          %s138 = sadd.s32 %s134, %s137
          %s139 = smul.addr %s138, 4
          %s140 = scalar_lea.hbm %s0, %s139
          %s142 = sshll.u32 %s140, 4
          %s143 = int_to_ptr.hbm [resolvable:$true] %s142
          %s144 = sshll.u32 %s133, 4
          %s145 = int_to_ptr.vmem [resolvable:$true] %s144
          %147 = dma.hbm_to_vmem [thread:$0]  %s143, 128, %s145, %s130
        $region20: #{tpu_custom_call.1} parent=15 // pred_fallthru
          _
      $region16: #{tpu_custom_call.1} parent=5 // pred_fallthru
        _
      %p148 = scmp.le.s32.totalorder 1, %s15
      %p149 = scmp.lt.s32.totalorder %s15, 3
      %p150 = pnand %p148, %p149
      %p151 = pneg %p150
      // Predicated region
      $region21: #{tpu_custom_call.1} parent=5 // pred_check
        _
      $region22: #{tpu_custom_call.1} parent=5 // pred_check_branch
        %153 = sbr.rel (%p150) target = $region24
      $region23: #{tpu_custom_call.1} parent=5 // pred_region
        %s154 = ssub.s32 %s15, 1
        %s155 = sand.u32 %s42, 1
        %s156 = scalar_lea.sflag [#allocation3], %s155
        %s157 = sand.u32 %s42, 1
        %s158 = smul.addr %s157, 8
        %s159 = scalar_lea.vmem [#allocation2], %s158
        // Predicated region
        $region25: #{tpu_custom_call.1} parent=23 // pred_check
          %p160 = pneg %p55
        $region26: #{tpu_custom_call.1} parent=23 // pred_check_branch
          %162 = sbr.rel (%p160) target = $region28
        $region27: #{tpu_custom_call.1} parent=23 // pred_region
          %164 = dma.done %s156, 128
        $region28: #{tpu_custom_call.1} parent=23 // pred_fallthru
          _
        %s165 = sand.u32 %s42, 1
        %s166 = scalar_lea.sflag [#allocation3], %s165
        %s167 = sand.u32 %s42, 1
        %s168 = smul.addr %s167, 8
        %s169 = scalar_lea.vmem [#allocation2], %s168
        %p170 = pneg %p55
        %p171 = pneg %p52
        %p172 = pneg %p81
        %p173 = pneg %p78
        %s174 = sand.u32 %s68, 1
        %s175 = scalar_lea.sflag [#allocation4], %s174
        %s176 = sand.u32 %s68, 1
        %s177 = smul.addr %s176, 4
        %s178 = scalar_lea.vmem [#allocation5], %s177
        %p179 = pneg %p107
        %p180 = pneg %p104
        %p181 = scmp.lt.s32.totalorder %s24, 1
        %s182 = scalar_select %p181, %s24, 1
        %s183 = smul.addr %s182, 4
        %s184 = scalar_lea.vmem %s2, %s183
        %s185 = smul.u32 2, %s25
        %p186 = scmp.lt.s32.totalorder %s24, 1
        %s187 = scalar_select %p186, %s24, 1
        %s188 = smul.addr %s187, 4
        %s189 = scalar_lea.vmem %s2, %s188
        %p190 = scmp.eq.s32.totalorder %s25, 0
        // Predicated region
        $region29: #{tpu_custom_call.1} parent=23 // pred_check
          %p191 = pneg %p190
        $region30: #{tpu_custom_call.1} parent=23 // pred_check_branch
          %193 = sbr.rel (%p191) target = $region32
        $region31: #{tpu_custom_call.1} parent=23 // pred_region
          %vm194 = vcmask 27648
          %195 = vst.msk [vmem:[%s178] sm:$0xf] %vm194, 0.0
          %vm196 = vcmask 3072
          %197 = vst.msk [vmem:[%s189] sm:$0xf] %vm196, 0.0
        $region32: #{tpu_custom_call.1} parent=23 // pred_fallthru
          _
        %v198 = vld [vmem:[%s159] sm:$0xff]
        %v199 = vld [vmem:[%s178] sm:$0xf]
        %201 = vst [vmem:[#allocation1] ss:$2 sm:$0xff] %v198
        %v202 = vld.sshfl [vmem:[#allocation1] sm:$0xff pattern:$0x75316420]
        %v203 = vld.sshfl [vmem:[#allocation1 + $0x8] sm:$0xff pattern:$0x75316420]
        %206 = vst [vmem:[#allocation1] ss:$2 sm:$0xff] %v198
        %v207 = vld.sshfl [vmem:[#allocation1] sm:$0xff pattern:$0x75316420]
        %v208 = vld.sshfl [vmem:[#allocation1 + $0x8] sm:$0xff pattern:$0x75316420]
        %211 = vmatpush.xpose.msra.mxu0 0.0
        %212 = vmatpush.xpose.msra.mxu0 0.0
        %213 = vmatpush.xpose.msra.mxu0 0.0
        %214 = vmatpush.xpose.msra.mxu0 0.0
        %215 = vmatpush.xpose.msra.mxu0 0.0
        %216 = vmatpush.xpose.msra.mxu0 0.0
        %217 = vmatpush.xpose.msra.mxu0 0.0
        %218 = vmatpush.xpose.msra.mxu0 0.0
        %219 = vmatpush.xpose.msra.mxu0 0.0
        %220 = vmatpush.xpose.msra.mxu0 0.0
        %221 = vmatpush.xpose.msra.mxu0 0.0
        %222 = vmatpush.xpose.msra.mxu0 0.0
        %223 = vmatpush.xpose.msra.mxu0 0.0
        %224 = vmatpush.xpose.msra.mxu0 0.0
        %225 = vmatpush.xpose.msra.mxu0 0.0
        %226 = vmatpush.xpose.msra.mxu0 %v207
        %227 = vmatmul.f32.gmra.mxu0 %v202
        %v228 = vpop.f32.mrf.mxu0
        %v229 = vadd.f32 0.0, %v228
        %230 = vdwg.mxu0
        %231 = vmatpush.xpose.msra.mxu0 0.0
        %232 = vmatpush.xpose.msra.mxu0 0.0
        %233 = vmatpush.xpose.msra.mxu0 0.0
        %234 = vmatpush.xpose.msra.mxu0 0.0
        %235 = vmatpush.xpose.msra.mxu0 0.0
        %236 = vmatpush.xpose.msra.mxu0 0.0
        %237 = vmatpush.xpose.msra.mxu0 0.0
        %238 = vmatpush.xpose.msra.mxu0 0.0
        %239 = vmatpush.xpose.msra.mxu0 0.0
        %240 = vmatpush.xpose.msra.mxu0 0.0
        %241 = vmatpush.xpose.msra.mxu0 0.0
        %242 = vmatpush.xpose.msra.mxu0 0.0
        %243 = vmatpush.xpose.msra.mxu0 0.0
        %244 = vmatpush.xpose.msra.mxu0 0.0
        %245 = vmatpush.xpose.msra.mxu0 0.0
        %246 = vmatpush.xpose.msra.mxu0 %v208
        %247 = vmatmul.f32.gmra.mxu0 %v203
        %v248 = vpop.f32.mrf.mxu0
        %v249 = vadd.f32 %v229, %v248
        %250 = vdwg.mxu0
        %v251 = vadd.f32 %v199, %v249
        %vm252 = vcmask 27648
        %253 = vst.msk [vmem:[%s178] sm:$0xf] %vm252, %v251
        %v254 = vld [vmem:[%s189] sm:$0xf]
        %255 = vst [vmem:[#allocation1] ss:$2 sm:$0xff] %v198
        %v256 = vld.sshfl [vmem:[#allocation1] sm:$0xff pattern:$0x75316420]
        %v257 = vld.sshfl [vmem:[#allocation1 + $0x8] sm:$0xff pattern:$0x75316420]
        %vm260 = vcmask 1043456
        %v261 = vsel %vm260, %v256, 0.0
        %v262 = vsel %vm260, %v257, 0.0
        %v263 = vadd.f32 %v261, %v262
        %264 = vadd.xlane.f32.xlu0 %v263
        %v265 = vpop.xlane.xlu0 %264
        %v266 = vadd.f32 %v254, %v265
        %vm267 = vcmask 3072
        %268 = vst.msk [vmem:[%s189] sm:$0xf] %vm267, %v266
        %s269 = sand.u32 %s68, 1
        %s270 = scalar_lea.sflag [#allocation4], %s269
        %s271 = sand.u32 %s68, 1
        %s272 = smul.addr %s271, 4
        %s273 = scalar_lea.vmem [#allocation5], %s272
        %p274 = scmp.lt.s32.totalorder %s24, 1
        %s275 = scalar_select %p274, %s24, 1
        %s276 = smul.addr %s275, 4
        %s277 = scalar_lea.vmem %s2, %s276
        // Predicated region
        $region33: #{tpu_custom_call.1} parent=23 // pred_check
          %p278 = pneg %p78
        $region34: #{tpu_custom_call.1} parent=23 // pred_check_branch
          %280 = sbr.rel (%p278) target = $region36
        $region35: #{tpu_custom_call.1} parent=23 // pred_region
          %282 = vsyncadd %s270, 0
          %s283 = smul.addr %s24, 4
          %s284 = scalar_lea.hbm %s1, %s283
          %s286 = sshll.u32 %s273, 4
          %s287 = int_to_ptr.vmem [resolvable:$true] %s286
          %s288 = sshll.u32 %s284, 4
          %s289 = int_to_ptr.hbm [resolvable:$true] %s288
          %291 = dma.vmem_to_hbm [thread:$0]  %s287, 64, %s289, %s270
        $region36: #{tpu_custom_call.1} parent=23 // pred_fallthru
          _
        // Predicated region
        $region37: #{tpu_custom_call.1} parent=23 // pred_check
          %p292 = pneg %p104
        $region38: #{tpu_custom_call.1} parent=23 // pred_check_branch
          %294 = sbr.rel (%p292) target = $region40
        $region39: #{tpu_custom_call.1} parent=23 // pred_region
          _
        $region40: #{tpu_custom_call.1} parent=23 // pred_fallthru
          _
      $region24: #{tpu_custom_call.1} parent=5 // pred_fallthru
        _
      %p295 = scmp.le.s32.totalorder 2, %s15
      // Predicated region
      $region41: #{tpu_custom_call.1} parent=5 // pred_check
        %p296 = pneg %p295
      $region42: #{tpu_custom_call.1} parent=5 // pred_check_branch
        %298 = sbr.rel (%p296) target = $region44
      $region43: #{tpu_custom_call.1} parent=5 // pred_region
        %s299 = ssub.s32 %s15, 2
        // Predicated region
        $region45: #{tpu_custom_call.1} parent=43 // pred_check
          %p300 = pneg %p84
        $region46: #{tpu_custom_call.1} parent=43 // pred_check_branch
          %302 = sbr.rel (%p300) target = $region48
        $region47: #{tpu_custom_call.1} parent=43 // pred_region
          %s303 = sand.u32 %s69, 1
          %s304 = scalar_lea.sflag [#allocation4], %s303
          %s305 = sand.u32 %s69, 1
          %s306 = smul.addr %s305, 4
          %s307 = scalar_lea.vmem [#allocation5], %s306
          %309 = dma.done %s304, 64
        $region48: #{tpu_custom_call.1} parent=43 // pred_fallthru
          _
        // Predicated region
        $region49: #{tpu_custom_call.1} parent=43 // pred_check
          %p310 = pneg %p110
        $region50: #{tpu_custom_call.1} parent=43 // pred_check_branch
          %312 = sbr.rel (%p310) target = $region52
        $region51: #{tpu_custom_call.1} parent=43 // pred_region
          %p313 = scmp.lt.s32.totalorder %s26, 1
          %s314 = scalar_select %p313, %s26, 1
          %s315 = smul.addr %s314, 4
          %s316 = scalar_lea.vmem %s2, %s315
        $region52: #{tpu_custom_call.1} parent=43 // pred_fallthru
          _
      $region44: #{tpu_custom_call.1} parent=5 // pred_fallthru
        _
    $region6: #{tpu_custom_call.1} parent=1 // loop_footer
      %s19 = sadd.s32 1, %s15
    $region7: #{tpu_custom_call.1} parent=1 // loop_footer_branch
      %14 = sbr.rel target = $region3
    $region8: #{tpu_custom_call.1} parent=1 // loop_exit
      _
    %317 = vsyncpa [#allocation3], 1
    %s318 = scalar_lea.sflag [#allocation3], 1
    %319 = vsyncpa %s318, 1
    %320 = vsyncpa [#allocation4], 1
    %s321 = scalar_lea.sflag [#allocation4], 1
    %322 = vsyncpa %s321, 1

</llo_original>
